<compile_context>
chip_gen: v5e
topology: v5e:2x2
jax: 0.10.0
libtpu: 0.0.40
codegen_flags: <defaults>
</compile_context>

<pallas_src>
import functools

import jax
import jax.numpy as jnp
from jax.experimental import pallas as pl
from jax.experimental.pallas import tpu as pltpu


def _round_up(x, m):
    return ((x + m - 1) // m) * m


def dgi_geometry(N, F_in, Hid):
    """Padded / tiled geometry shared by prepare_adjacency and dgi_forward."""
    HID = _round_up(Hid, 128)          # lane-dense hidden width
    FP = _round_up(F_in, 128)          # lane-dense feature width
    if N <= 256:
        TM = _round_up(N, 8)
        NP = TM
    else:
        TM = 256
        NP = _round_up(N, TM)
    nb = NP // TM
    # K tile for the A reduction in kernel 2: largest standard tile dividing NP.
    TK = TM
    for cand in (2048, 1024, 512, 256):
        if cand <= NP and NP % cand == 0:
            TK = cand
            break
    nk = NP // TK
    return dict(HID=HID, FP=FP, TM=TM, NP=NP, nb=nb, TK=TK, nk=nk)


def prepare_adjacency(A, NP):
    """Pad + cast the adjacency ONCE per training run (A is static across steps)."""
    N = A.shape[0]
    return jnp.pad(A.astype(jnp.float32),
                   ((0, NP - N), (0, NP - N))).astype(jnp.bfloat16)


# ---------------------------------------------------------------------------
# Kernel 1: support_cat = [x ; neg_x] @ W_gc   (bf16 in, f32 acc, bf16 out)
#   grid = (2, nb): axis 0 = branch (pos / neg), axis 1 = row block.
#   Output is column-concatenated: (NP, 2*HID) = [sup_pos | sup_neg].
# ---------------------------------------------------------------------------
def _support_kernel(x_ref, w_ref, out_ref):
    out_ref[...] = jnp.dot(x_ref[...], w_ref[...],
                           preferred_element_type=jnp.float32
                           ).astype(jnp.bfloat16)


# ---------------------------------------------------------------------------
# Kernel 2: A_blk @ support_cat + b  -> PReLU -> H (f32), Hn (bf16), csum.
#   grid = (nb, nk): row blocks of A x K-reduction tiles; A streamed once.
# ---------------------------------------------------------------------------
def _gcn_prelu_kernel(a_ref, sup_ref, b_ref, alpha_ref,
                      h_ref, hn_ref, csum_ref, acc_ref,
                      *, tm, hid_pad, n_valid, nb, has_pad):
    k = pl.program_id(1)
    nk = pl.num_programs(1)

    @pl.when(k == 0)
    def _():
        acc_ref[...] = jnp.zeros_like(acc_ref)

    acc_ref[...] += jnp.dot(a_ref[...], sup_ref[...],
                            preferred_element_type=jnp.float32)

    @pl.when(k == nk - 1)
    def _():
        alpha = alpha_ref[0]
        hhh = acc_ref[...] + b_ref[...]
        act = jnp.where(hhh > 0, hhh, alpha * hhh)            # PReLU
        h = act[:, :hid_pad]
        h_ref[...] = h
        hn_ref[...] = act[:, hid_pad:].astype(hn_ref.dtype)

        if has_pad:
            i = pl.program_id(0)

            # Only the last row block contains padded rows -> mask only there.
            @pl.when(i == nb - 1)
            def _():
                row = (jax.lax.broadcasted_iota(jnp.int32, (tm, hid_pad), 0)
                       + i * tm)
                valid = (row < n_valid).astype(jnp.float32)
                csum_ref[...] = jnp.sum(h * valid, axis=0, keepdims=True)

            @pl.when(i != nb - 1)
            def _():
                csum_ref[...] = jnp.sum(h, axis=0, keepdims=True)
        else:
            csum_ref[...] = jnp.sum(h, axis=0, keepdims=True)


# ---------------------------------------------------------------------------
# Kernel 3: discriminator scores  [H ; Hn] @ y  (lane-dense (1, TM) outputs,
# NT dot_general per row block; Hn read in bf16).
# ---------------------------------------------------------------------------
def _scores_kernel(h_ref, hn_ref, y_ref, sp_ref, sn_ref):
    nt = (((1,), (1,)), ((), ()))
    y = y_ref[...]                                            # (1, HID) f32
    sp_ref[...] = jax.lax.dot_general(y, h_ref[...], nt,
                                      preferred_element_type=jnp.float32)
    sn_ref[...] = jax.lax.dot_general(y.astype(hn_ref.dtype), hn_ref[...], nt,
                                      preferred_element_type=jnp.float32)


def dgi_forward(X, A_prepared, W_gc, b_gc, W_fc, prelu_alpha, dropout_p, key,
                training=True):
    """Returns (scores (2N,), labels (2N,), smooth_loss, H (N,Hid), gc_weight).

    A_prepared must come from prepare_adjacency(A, dgi_geometry(...)["NP"]).
    """
    N, F_in = X.shape
    Hid = W_gc.shape[1]
    g = dgi_geometry(N, F_in, Hid)
    HID, FP, TM, NP = g["HID"], g["FP"], g["TM"], g["NP"]
    nb, TK, nk = g["nb"], g["TK"], g["nk"]
    assert A_prepared.shape == (NP, NP)

    k_perm, k_dp, k_dn = jax.random.split(key, 3)

    # node_shuffle corruption (gather glue outside the kernel)
    perm = jax.random.permutation(k_perm, N)
    neg_X = X[perm]

    keep = 1.0 - float(dropout_p)
    apply_dropout = bool(training) and float(dropout_p) > 0.0
    if apply_dropout:
        # Dropout in the (fused) XLA glue; 1/keep scale folded into W_gc below
        # (exact: bias is added after A @ (x @ W) in kernel 2).
        Xd = jnp.where(jax.random.bernoulli(k_dp, keep, X.shape), X, 0.0)
        negXd = jnp.where(jax.random.bernoulli(k_dn, keep, X.shape), neg_X, 0.0)
        w_scale = 1.0 / keep
    else:
        Xd, negXd = X, neg_X
        w_scale = 1.0

    # bf16 activation stream; f32 MXU accumulation inside the kernels.
    Xp = jnp.pad(Xd.astype(jnp.bfloat16), ((0, NP - N), (0, FP - F_in)))
    negXp = jnp.pad(negXd.astype(jnp.bfloat16), ((0, NP - N), (0, FP - F_in)))
    x_cat = jnp.concatenate([Xp, negXp], axis=0)              # (2*NP, FP) bf16

    W_gc_p = (jnp.pad(W_gc.astype(jnp.float32),
                      ((0, FP - F_in), (0, HID - Hid)))
              * jnp.float32(w_scale)).astype(jnp.bfloat16)
    b_p = jnp.pad(b_gc.reshape(1, Hid).astype(jnp.float32),
                  ((0, 0), (0, HID - Hid)))
    b2 = jnp.concatenate([b_p, b_p], axis=1)                  # (1, 2*HID)
    alpha = jnp.asarray([prelu_alpha], jnp.float32)

    smem = pl.BlockSpec(memory_space=pltpu.MemorySpace.SMEM)
    # K-tiled design keeps per-step footprint small; 48 MiB fits v7x's 64 MiB
    # physical VMEM and leaves headroom on v5e/v6e (128 MiB).
    VMEM_LIMIT = 48 * 1024 * 1024

    # ---- kernel 1: [x ; neg_x] @ W_gc for both branches ---------------------
    support = pl.pallas_call(
        _support_kernel,
        grid=(2, nb),
        in_specs=[
            pl.BlockSpec((TM, FP), lambda b, i: (b * nb + i, 0)),     # [X;negX]
            pl.BlockSpec((FP, HID), lambda b, i: (0, 0)),             # W_gc
        ],
        out_specs=pl.BlockSpec((TM, HID), lambda b, i: (i, b)),       # col-concat
        out_shape=jax.ShapeDtypeStruct((NP, 2 * HID), jnp.bfloat16),
        compiler_params=pltpu.CompilerParams(
            dimension_semantics=("parallel", "parallel"),
            vmem_limit_bytes=VMEM_LIMIT),
    )(x_cat, W_gc_p)

    # ---- kernel 2: single K-tiled pass over A for both branches -------------
    has_pad = NP != N
    H_pad, Hn_pad, csum = pl.pallas_call(
        functools.partial(_gcn_prelu_kernel, tm=TM, hid_pad=HID,
                          n_valid=N, nb=nb, has_pad=has_pad),
        grid=(nb, nk),
        in_specs=[
            pl.BlockSpec((TM, TK), lambda i, k: (i, k)),              # A tile
            pl.BlockSpec((TK, 2 * HID), lambda i, k: (k, 0)),         # support
            pl.BlockSpec((1, 2 * HID), lambda i, k: (0, 0)),          # bias x2
            smem,                                                     # alpha
        ],
        out_specs=(
            pl.BlockSpec((TM, HID), lambda i, k: (i, 0)),
            pl.BlockSpec((TM, HID), lambda i, k: (i, 0)),
            pl.BlockSpec((1, HID), lambda i, k: (i, 0)),
        ),
        out_shape=(
            jax.ShapeDtypeStruct((NP, HID), jnp.float32),   # H (returned): f32
            jax.ShapeDtypeStruct((NP, HID), jnp.bfloat16),  # Hn (internal): bf16
            jax.ShapeDtypeStruct((nb, HID), jnp.float32),   # partial col sums
        ),
        scratch_shapes=[pltpu.VMEM((TM, 2 * HID), jnp.float32)],
        compiler_params=pltpu.CompilerParams(
            dimension_semantics=("parallel", "arbitrary"),
            vmem_limit_bytes=VMEM_LIMIT),
    )(A_prepared, support, b2, alpha)

    # ---- readout + fc (O(Hid) work, JAX glue between the big kernels) -------
    mean_h = jnp.sum(csum, axis=0)[:Hid] / jnp.float32(N)
    s = jax.nn.sigmoid(mean_h)                                        # (Hid,)
    y = s @ W_fc.T                                                    # (Hid,)
    y_row = jnp.zeros((1, HID), jnp.float32).at[0, :Hid].set(y)

    # ---- kernel 3: scores epilogue ------------------------------------------
    spos, sneg = pl.pallas_call(
        _scores_kernel,
        grid=(nb,),
        in_specs=[
            pl.BlockSpec((TM, HID), lambda i: (i, 0)),
            pl.BlockSpec((TM, HID), lambda i: (i, 0)),
            pl.BlockSpec((1, HID), lambda i: (0, 0)),
        ],
        out_specs=(
            pl.BlockSpec((1, TM), lambda i: (0, i)),
            pl.BlockSpec((1, TM), lambda i: (0, i)),
        ),
        out_shape=(
            jax.ShapeDtypeStruct((1, NP), jnp.float32),
            jax.ShapeDtypeStruct((1, NP), jnp.float32),
        ),
        compiler_params=pltpu.CompilerParams(
            dimension_semantics=("parallel",),
            vmem_limit_bytes=VMEM_LIMIT),
    )(H_pad, Hn_pad, y_row)

    scores = jnp.concatenate([spos[0, :N], sneg[0, :N]])
    labels = jnp.concatenate([jnp.ones((N,), jnp.float32),
                              jnp.zeros((N,), jnp.float32)])
    smooth_loss = jnp.float32(0.0)
    H = H_pad[:N, :Hid]
    return scores, labels, smooth_loss, H, W_gc


def _dgi_reference(X, A, W_gc, b_gc, W_fc, alpha, key):
    """Pure-JAX f32 reference (dropout disabled) for a sanity check."""
    k_perm = jax.random.split(key, 3)[0]
    perm = jax.random.permutation(k_perm, X.shape[0])
    neg_X = X[perm]

    def gcn(x):
        h = A @ (x @ W_gc) + b_gc
        return jnp.where(h > 0, h, alpha * h)

    H = gcn(X)
    Hn = gcn(neg_X)
    s = jax.nn.sigmoid(H.mean(axis=0))
    y = s @ W_fc.T
    scores = jnp.concatenate([H, Hn], axis=0) @ y
    return scores, H


if __name__ == "__main__":
    N, F_in, Hid = 64, 32, 32       # nodes, num_feat, num_hid
    dropout_p = 0.5
    prelu_alpha = 0.25              # nn.PReLU() default init

    key = jax.random.PRNGKey(0)
    kx, ka, kw, kb, kfc, kfwd = jax.random.split(key, 6)

    X = jax.random.normal(kx, (N, F_in), jnp.float32)

    # simple symmetric row-normalized adjacency with self loops
    A_raw = (jax.random.uniform(ka, (N, N)) < 0.1).astype(jnp.float32)
    A_raw = jnp.maximum(A_raw, A_raw.T) + jnp.eye(N, dtype=jnp.float32)
    A = A_raw / jnp.sum(A_raw, axis=1, keepdims=True)

    # GraphConvolution params (pygcn-style uniform init, deterministic here)
    stdv = 1.0 / jnp.sqrt(jnp.float32(Hid))
    W_gc = jax.random.uniform(kw, (F_in, Hid), jnp.float32, -stdv, stdv)
    b_gc = jax.random.uniform(kb, (Hid,), jnp.float32, -stdv, stdv)

    # fc = Linear(Hid, Hid, bias=False); torch stores weight as (out, in)
    W_fc = jax.random.uniform(kfc, (Hid, Hid), jnp.float32, -stdv, stdv)

    # adjacency prepared ONCE (static across training steps)
    geom = dgi_geometry(N, F_in, Hid)
    A_prep = prepare_adjacency(A, geom["NP"])

    # training forward (dropout on)
    scores, labels, smooth_loss, H, gc_w = dgi_forward(
        X, A_prep, W_gc, b_gc, W_fc, prelu_alpha, dropout_p, kfwd,
        training=True)
    jax.block_until_ready((scores, labels, smooth_loss, H))
    assert scores.shape == (2 * N,)
    assert labels.shape == (2 * N,)
    assert H.shape == (N, Hid)

    # dropout-off run checked against pure-JAX f32 reference
    # (loose tolerance: bf16 operands with f32 accumulation)
    scores_e, _, _, H_e, _ = dgi_forward(
        X, A_prep, W_gc, b_gc, W_fc, prelu_alpha, dropout_p, kfwd,
        training=False)
    scores_r, H_r = _dgi_reference(X, A, W_gc, b_gc, W_fc, prelu_alpha, kfwd)
    assert jnp.allclose(H_e, H_r, rtol=1e-1, atol=1e-1), "H mismatch vs reference"
    assert jnp.allclose(scores_e, scores_r, rtol=1e-1, atol=1e-1), "scores mismatch vs reference"

    print("KERNEL_OK")
</pallas_src>

<mosaic_0001>
module attributes {stable_mosaic.version = 11 : i64} {
  func.func @_support_kernel(%arg0: i32, %arg1: i32, %arg2: memref<64x128xbf16, #tpu.memory_space<vmem>>, %arg3: memref<128x128xbf16, #tpu.memory_space<vmem>>, %arg4: memref<64x128xbf16, #tpu.memory_space<vmem>>) attributes {dimension_semantics = [#tpu.dimension_semantics<parallel>, #tpu.dimension_semantics<parallel>], iteration_bounds = array<i64: 2, 1>, scalar_prefetch = 0 : i64, scratch_operands = 0 : i64, tpu.core_type = #tpu.core_type<tc>, window_params = [{transform_indices = @transform_0, window_bounds = array<i64: 64, 128>}, {pipeline_mode = #tpu.pipeline_mode<synchronous>, transform_indices = @transform_1, window_bounds = array<i64: 128, 128>}, {transform_indices = @transform_2, window_bounds = array<i64: 64, 128>}]} {
    %c0 = arith.constant 0 : index
    %c0_0 = arith.constant 0 : index
    %0 = vector.load %arg2[%c0, %c0_0] : memref<64x128xbf16, #tpu.memory_space<vmem>>, vector<64x128xbf16>
    %c0_1 = arith.constant 0 : index
    %c0_2 = arith.constant 0 : index
    %1 = vector.load %arg3[%c0_1, %c0_2] : memref<128x128xbf16, #tpu.memory_space<vmem>>, vector<128x128xbf16>
    %cst = arith.constant dense<0.000000e+00> : vector<64x128xf32>
    %2 = tpu.matmul %0, %1, %cst {dimension_numbers = #tpu.dot_dimension_numbers<[1], [0], [0], [1], [0, 0, 1, 1], [], []>} : vector<64x128xbf16>, vector<128x128xbf16>, vector<64x128xf32> -> vector<64x128xf32>
    %3 = arith.truncf %2 : vector<64x128xf32> to vector<64x128xbf16>
    %c0_3 = arith.constant 0 : index
    %c0_4 = arith.constant 0 : index
    %4 = vector.load %arg4[%c0_3, %c0_4] : memref<64x128xbf16, #tpu.memory_space<vmem>>, vector<64x128xbf16>
    tpu.vector_store %arg4[%c0_3, %c0_4], %3 {strides = array<i32>} : memref<64x128xbf16, #tpu.memory_space<vmem>>, vector<64x128xbf16>,
    return
  }
  func.func @transform_0(%arg0: i32, %arg1: i32) -> (i32, i32) {
    %c1_i32 = arith.constant 1 : i32
    %0 = arith.muli %arg0, %c1_i32 : i32
    %1 = arith.addi %0, %arg1 : i32
    %c0_i32 = arith.constant 0 : i32
    %c0_i32_0 = arith.constant 0 : i32
    return %1, %c0_i32 : i32, i32
  }
  func.func @transform_1(%arg0: i32, %arg1: i32) -> (i32, i32) {
    %c0_i32 = arith.constant 0 : i32
    %c0_i32_0 = arith.constant 0 : i32
    %c0_i32_1 = arith.constant 0 : i32
    return %c0_i32, %c0_i32_0 : i32, i32
  }
  func.func @transform_2(%arg0: i32, %arg1: i32) -> (i32, i32) {
    %c0_i32 = arith.constant 0 : i32
    return %arg1, %arg0 : i32, i32
  }
}

</mosaic_0001>

<llo_original>
// kernel: tpu_custom_call.1
$region0: #{tpu_custom_call.1}
  #allocation0 [shape = 'u32[]', space=smem, size = 0x4, offset = 0x4, fixed_abs, tag = 'smem constant byte address 0x4 - core index']
  #allocation1 [shape = 'u32[72,128]{1,0:T(1,128)}', space=vmem, size = 0x9000, scoped, tag = 'internal scratch']
  %s0 = inlined_call_operand.hbm [shape: bf16[128,128], index: 0, kind: input, shape index: {}]
  %s1 = inlined_call_operand.hbm [shape: bf16[128,128], index: 1, kind: input, shape index: {}]
  %s2 = inlined_call_operand.hbm [shape: bf16[64,256], index: 2, kind: output, shape index: {}]
  %s3 = sld [smem:[#allocation0]]
  $region49: #{tpu_custom_call.1} parent=0
    _
  %s5 = ssub.s32 1, %s3
  %s6 = scalar_select 0, %s5, %s3
  $region1: #{tpu_custom_call.1} parent=0
    #allocation2 [shape = 'u8[32768]{0}', space=vmem, size = 0x8000, scoped, tag = 'input window, operand 0']
    #allocation3 [shape = 's32[2]{0}', space=sflag, size = 0x8, scoped, tag = 'scoped memory for tpu_custom_call.1']
    #allocation4 [shape = 's32[2]{0}', space=sflag, size = 0x8, scoped, tag = 'scoped memory for tpu_custom_call.1']
    #allocation5 [shape = 'u8[32768]{0}', space=vmem, size = 0x8000, scoped, tag = 'input window, operand 1, single buffered']
    #allocation6 [shape = 's32[1]{0}', space=sflag, size = 0x4, scoped, tag = 'scoped memory for tpu_custom_call.1']
    #allocation7 [shape = 'u8[32768]{0}', space=vmem, size = 0x8000, scoped, tag = 'output window, operand 0']
    %7 = vsyncpa [#allocation3], 0
    %s8 = scalar_lea.sflag [#allocation3], 1
    %9 = vsyncpa %s8, 0
    %10 = vsyncpa [#allocation6], 0
    %11 = vsyncpa [#allocation4], 0
    %s12 = scalar_lea.sflag [#allocation4], 1
    %13 = vsyncpa %s12, 0
    loop: start=0, step=1, limit=4
    $region2: #{tpu_custom_call.1} parent=1 // loop_pre_header
      _
    $region3: #{tpu_custom_call.1} parent=1 // loop_header
      %s15 = sphi 0, %s19
      %p16 = scmp.ge.s32.totalorder %s15, 4
      %s22 = sphi 0, %s34
      %s23 = sphi 0, %s30
      %s24 = sphi 0, %s22
      %s25 = sphi 0, %s23
      %s26 = sphi 0, %s24
      %s27 = sphi 0, %s25
      %s39 = sphi 0, %s41
      %s42 = sphi 0, %s39
      %s43 = sphi 0, %s42
      %s59 = sphi 0, %s43
      %s63 = sphi 0, %s63
      %s65 = sphi 0, %s63
      %s66 = sphi 0, %s65
      %s80 = sphi 0, %s66
      %s88 = sphi 0, %s90
      %s91 = sphi 0, %s88
      %s92 = sphi 0, %s91
      %s108 = sphi 0, %s92
    $region4: #{tpu_custom_call.1} parent=1 // loop_header_branch
      %18 = sbr.rel (%p16) target = $region8
    $region5: #{tpu_custom_call.1} parent=1 // loop_body
      %s20 = ssub.s32 %s15, 1
      %s21 = ssub.s32 %s15, 2
      %s28 = sadd.s32 1, %s23
      %p29 = scmp.ge.s32.totalorder %s28, 1
      %s30 = scalar_select %p29, 0, %s28
      %s31 = sadd.s32 1, %s22
      %s32 = scalar_select %p29, %s31, %s22
      %p33 = scmp.ge.s32.totalorder %s32, 2
      %s34 = scalar_select %p33, 0, %s32
      %s35 = sadd.s32 %s22, %s23
      %s36 = sadd.s32 %s34, %s30
      %s37 = ssub.s32 %s35, %s36
      %p38 = scmp.eq.s32.totalorder %s37, 0
      %s40 = sadd.s32 %s39, 1
      %s41 = scalar_select %p38, %s39, %s40
      %p44 = pneg %p38
      %p45 = scmp.eq.s32.totalorder %s15, 1
      %p46 = por %p44, %p45
      %p47 = scmp.ne.s32.totalorder %s39, %s42
      %p48 = scmp.eq.s32.totalorder %s15, 0
      %p49 = por %p47, %p48
      %p50 = scmp.ne.s32.totalorder %s39, %s42
      %p51 = scmp.eq.s32.totalorder %s20, 1
      %p52 = por %p50, %p51
      %p53 = scmp.ne.s32.totalorder %s42, %s43
      %p54 = scmp.eq.s32.totalorder %s20, 0
      %p55 = por %p53, %p54
      %p56 = scmp.ne.s32.totalorder %s42, %s43
      %p57 = scmp.eq.s32.totalorder %s21, 1
      %p58 = por %p56, %p57
      %p60 = scmp.ne.s32.totalorder %s43, %s59
      %p61 = scmp.eq.s32.totalorder %s21, 0
      %p62 = por %p60, %p61
      %s64 = sadd.s32 %s63, 1
      %p67 = scmp.eq.s32.totalorder %s15, 1
      %p68 = scmp.ne.s32.totalorder %s63, %s65
      %p69 = scmp.eq.s32.totalorder %s15, 0
      %p70 = por %p68, %p69
      %p71 = scmp.ne.s32.totalorder %s63, %s65
      %p72 = scmp.eq.s32.totalorder %s20, 1
      %p73 = por %p71, %p72
      %p74 = scmp.ne.s32.totalorder %s65, %s66
      %p75 = scmp.eq.s32.totalorder %s20, 0
      %p76 = por %p74, %p75
      %p77 = scmp.ne.s32.totalorder %s65, %s66
      %p78 = scmp.eq.s32.totalorder %s21, 1
      %p79 = por %p77, %p78
      %p81 = scmp.ne.s32.totalorder %s66, %s80
      %p82 = scmp.eq.s32.totalorder %s21, 0
      %p83 = por %p81, %p82
      %s84 = ssub.s32 %s23, %s30
      %s85 = ssub.s32 %s22, %s34
      %s86 = sor.u32 %s84, %s85
      %p87 = scmp.eq.s32.totalorder %s86, 0
      %s89 = sadd.s32 %s88, 1
      %s90 = scalar_select %p87, %s88, %s89
      %p93 = pneg %p87
      %p94 = scmp.eq.s32.totalorder %s15, 1
      %p95 = por %p93, %p94
      %p96 = scmp.ne.s32.totalorder %s88, %s91
      %p97 = scmp.eq.s32.totalorder %s15, 0
      %p98 = por %p96, %p97
      %p99 = scmp.ne.s32.totalorder %s88, %s91
      %p100 = scmp.eq.s32.totalorder %s20, 1
      %p101 = por %p99, %p100
      %p102 = scmp.ne.s32.totalorder %s91, %s92
      %p103 = scmp.eq.s32.totalorder %s20, 0
      %p104 = por %p102, %p103
      %p105 = scmp.ne.s32.totalorder %s91, %s92
      %p106 = scmp.eq.s32.totalorder %s21, 1
      %p107 = por %p105, %p106
      %p109 = scmp.ne.s32.totalorder %s92, %s108
      %p110 = scmp.eq.s32.totalorder %s21, 0
      %p111 = por %p109, %p110
      %p112 = scmp.le.s32.totalorder 1, %s15
      %p113 = scmp.lt.s32.totalorder %s15, 3
      %p114 = pnand %p112, %p113
      %p115 = pneg %p114
      // Predicated region
      $region9: #{tpu_custom_call.1} parent=5 // pred_check
        _
      $region10: #{tpu_custom_call.1} parent=5 // pred_check_branch
        %117 = sbr.rel (%p114) target = $region12
      $region11: #{tpu_custom_call.1} parent=5 // pred_region
        %s118 = ssub.s32 %s15, 1
        // Predicated region
        $region13: #{tpu_custom_call.1} parent=11 // pred_check
          %p119 = pneg %p76
        $region14: #{tpu_custom_call.1} parent=11 // pred_check_branch
          %121 = sbr.rel (%p119) target = $region16
        $region15: #{tpu_custom_call.1} parent=11 // pred_region
          %123 = vsyncadd [#allocation6], 0
          %s124 = sshll.u32 %s1, 4
          %s125 = int_to_ptr.hbm [resolvable:$true] %s124
          %s126 = sshll.u32 [#allocation5], 4
          %s127 = int_to_ptr.vmem [resolvable:$true] %s126
          %132 = dma.hbm_to_vmem [thread:$0]  %s125, 1024, %s127, [#allocation6], 64, 64, 4
        $region16: #{tpu_custom_call.1} parent=11 // pred_fallthru
          _
      $region12: #{tpu_custom_call.1} parent=5 // pred_fallthru
        _
      %p133 = scmp.lt.s32.totalorder %s15, 2
      // Predicated region
      $region17: #{tpu_custom_call.1} parent=5 // pred_check
        %p134 = pneg %p133
      $region18: #{tpu_custom_call.1} parent=5 // pred_check_branch
        %136 = sbr.rel (%p134) target = $region20
      $region19: #{tpu_custom_call.1} parent=5 // pred_region
        // Predicated region
        $region21: #{tpu_custom_call.1} parent=19 // pred_check
          %p137 = pneg %p49
        $region22: #{tpu_custom_call.1} parent=19 // pred_check_branch
          %139 = sbr.rel (%p137) target = $region24
        $region23: #{tpu_custom_call.1} parent=19 // pred_region
          %s140 = sand.u32 %s39, 1
          %s141 = scalar_lea.sflag [#allocation3], %s140
          %s142 = sand.u32 %s39, 1
          %s143 = smul.addr %s142, 32
          %s144 = scalar_lea.vmem [#allocation2], %s143
          %s145 = sadd.s32 %s22, %s23
          %s146 = smul.u32 8, %s145
          %148 = vsyncadd %s141, 0
          %s149 = smul.addr %s146, 4
          %s150 = scalar_lea.hbm %s0, %s149
          %s151 = sshll.u32 %s150, 4
          %s152 = int_to_ptr.hbm [resolvable:$true] %s151
          %s153 = sshll.u32 %s144, 4
          %s154 = int_to_ptr.vmem [resolvable:$true] %s153
          %159 = dma.hbm_to_vmem [thread:$0]  %s152, 512, %s154, %s141, 64, 64, 4
        $region24: #{tpu_custom_call.1} parent=19 // pred_fallthru
          _
      $region20: #{tpu_custom_call.1} parent=5 // pred_fallthru
        _
      %p160 = scmp.le.s32.totalorder 1, %s15
      %p161 = scmp.lt.s32.totalorder %s15, 3
      %p162 = pnand %p160, %p161
      %p163 = pneg %p162
      // Predicated region
      $region25: #{tpu_custom_call.1} parent=5 // pred_check
        _
      $region26: #{tpu_custom_call.1} parent=5 // pred_check_branch
        %165 = sbr.rel (%p162) target = $region28
      $region27: #{tpu_custom_call.1} parent=5 // pred_region
        %s166 = ssub.s32 %s15, 1
        %s167 = sand.u32 %s42, 1
        %s168 = scalar_lea.sflag [#allocation3], %s167
        %s169 = sand.u32 %s42, 1
        %s170 = smul.addr %s169, 32
        %s171 = scalar_lea.vmem [#allocation2], %s170
        // Predicated region
        $region29: #{tpu_custom_call.1} parent=27 // pred_check
          %p172 = pneg %p55
        $region30: #{tpu_custom_call.1} parent=27 // pred_check_branch
          %174 = sbr.rel (%p172) target = $region32
        $region31: #{tpu_custom_call.1} parent=27 // pred_region
          %176 = dma.done %s168, 512
        $region32: #{tpu_custom_call.1} parent=27 // pred_fallthru
          _
        // Predicated region
        $region33: #{tpu_custom_call.1} parent=27 // pred_check
          %p177 = pneg %p76
        $region34: #{tpu_custom_call.1} parent=27 // pred_check_branch
          %179 = sbr.rel (%p177) target = $region36
        $region35: #{tpu_custom_call.1} parent=27 // pred_region
          %181 = dma.done [#allocation6], 1024
        $region36: #{tpu_custom_call.1} parent=27 // pred_fallthru
          _
        %s182 = sand.u32 %s42, 1
        %s183 = scalar_lea.sflag [#allocation3], %s182
        %s184 = sand.u32 %s42, 1
        %s185 = smul.addr %s184, 32
        %s186 = scalar_lea.vmem [#allocation2], %s185
        %p187 = pneg %p55
        %p188 = pneg %p52
        %p189 = pneg %p76
        %p190 = pneg %p73
        %p191 = pneg %p104
        %p192 = pneg %p101
        %s193 = sand.u32 %s91, 1
        %s194 = scalar_lea.sflag [#allocation4], %s193
        %s195 = sand.u32 %s91, 1
        %s196 = smul.addr %s195, 32
        %s197 = scalar_lea.vmem [#allocation7], %s196
        %s198 = sadd.s32 %s24, %s25
        %s199 = smul.u32 8, %s198
        %s200 = smul.u32 8, %s25
        %v201 = vld [vmem:[%s171] sm:$0xf]
        %v202 = vld [vmem:[%s171 + $0x4] sm:$0xf]
        %v203 = vld [vmem:[%s171 + $0x8] sm:$0xf]
        %v204 = vld [vmem:[%s171 + $0xc] sm:$0xf]
        %v205 = vld [vmem:[%s171 + $0x10] sm:$0xf]
        %v206 = vld [vmem:[%s171 + $0x14] sm:$0xf]
        %v207 = vld [vmem:[%s171 + $0x18] sm:$0xf]
        %v208 = vld [vmem:[%s171 + $0x1c] sm:$0xf]
        %v209 = vld [vmem:[#allocation5] sm:$0xf]
        %v210 = vld [vmem:[#allocation5 + $0x4] sm:$0xf]
        %v211 = vld [vmem:[#allocation5 + $0x8] sm:$0xf]
        %v212 = vld [vmem:[#allocation5 + $0xc] sm:$0xf]
        %v213 = vld [vmem:[#allocation5 + $0x10] sm:$0xf]
        %v214 = vld [vmem:[#allocation5 + $0x14] sm:$0xf]
        %v215 = vld [vmem:[#allocation5 + $0x18] sm:$0xf]
        %v216 = vld [vmem:[#allocation5 + $0x1c] sm:$0xf]
        %v217 = vld [vmem:[#allocation5 + $0x20] sm:$0xf]
        %v218 = vld [vmem:[#allocation5 + $0x24] sm:$0xf]
        %v219 = vld [vmem:[#allocation5 + $0x28] sm:$0xf]
        %v220 = vld [vmem:[#allocation5 + $0x2c] sm:$0xf]
        %v221 = vld [vmem:[#allocation5 + $0x30] sm:$0xf]
        %v222 = vld [vmem:[#allocation5 + $0x34] sm:$0xf]
        %v223 = vld [vmem:[#allocation5 + $0x38] sm:$0xf]
        %v224 = vld [vmem:[#allocation5 + $0x3c] sm:$0xf]
        %v233 = vunpack.c.l.b16 %v201
        %v234 = vunpack.c.l.b16 %v202
        %v235 = vunpack.c.l.b16 %v203
        %v236 = vunpack.c.l.b16 %v204
        %v237 = vunpack.c.l.b16 %v205
        %v238 = vunpack.c.l.b16 %v206
        %v239 = vunpack.c.l.b16 %v207
        %v240 = vunpack.c.l.b16 %v208
        %v241 = vpack.c.b16 %v234, %v233
        %v242 = vpack.c.b16 %v236, %v235
        %v243 = vpack.c.b16 %v238, %v237
        %v244 = vpack.c.b16 %v240, %v239
        %v265 = vunpack.c.l.b16 %v209
        %v266 = vunpack.c.l.b16 %v210
        %v267 = vunpack.c.l.b16 %v211
        %v268 = vunpack.c.l.b16 %v212
        %v269 = vunpack.c.l.b16 %v213
        %v270 = vunpack.c.l.b16 %v214
        %v271 = vunpack.c.l.b16 %v215
        %v272 = vunpack.c.l.b16 %v216
        %v273 = vunpack.c.l.b16 %v217
        %v274 = vunpack.c.l.b16 %v218
        %v275 = vunpack.c.l.b16 %v219
        %v276 = vunpack.c.l.b16 %v220
        %v277 = vunpack.c.l.b16 %v221
        %v278 = vunpack.c.l.b16 %v222
        %v279 = vunpack.c.l.b16 %v223
        %v280 = vunpack.c.l.b16 %v224
        %v281 = vpack.c.b16 %v266, %v265
        %v282 = vpack.c.b16 %v268, %v267
        %v283 = vpack.c.b16 %v270, %v269
        %v284 = vpack.c.b16 %v272, %v271
        %v285 = vpack.c.b16 %v274, %v273
        %v286 = vpack.c.b16 %v276, %v275
        %v287 = vpack.c.b16 %v278, %v277
        %v288 = vpack.c.b16 %v280, %v279
        %297 = vmatpush.bf16.msra.mxu0 %v288
        %298 = vmatpush.bf16.msra.mxu0 %v287
        %299 = vmatpush.bf16.msra.mxu0 %v286
        %300 = vmatpush.bf16.msra.mxu0 %v285
        %301 = vmatpush.bf16.msra.mxu0 %v284
        %302 = vmatpush.bf16.msra.mxu0 %v283
        %303 = vmatpush.bf16.msra.mxu0 %v282
        %304 = vmatpush.bf16.msra.mxu0 %v281
        %305 = vmatmul.bf16.gmra.mxu0 %v241
        %v306 = vpop.f32.mrf.mxu0
        %v307 = vadd.f32 0.0, %v306
        %v308 = vpop.f32.mrf.mxu0
        %v309 = vadd.f32 0.0, %v308
        %310 = vmatmul.bf16.gmra.mxu0 %v242
        %v311 = vpop.f32.mrf.mxu0
        %v312 = vadd.f32 0.0, %v311
        %v313 = vpop.f32.mrf.mxu0
        %v314 = vadd.f32 0.0, %v313
        %315 = vmatmul.bf16.gmra.mxu0 %v243
        %v316 = vpop.f32.mrf.mxu0
        %v317 = vadd.f32 0.0, %v316
        %v318 = vpop.f32.mrf.mxu0
        %v319 = vadd.f32 0.0, %v318
        %320 = vmatmul.bf16.gmra.mxu0 %v244
        %v321 = vpop.f32.mrf.mxu0
        %v322 = vadd.f32 0.0, %v321
        %v323 = vpop.f32.mrf.mxu0
        %v324 = vadd.f32 0.0, %v323
        %325 = vdwg.mxu0
        %v326 = vpack.c.bf16 %v307, %v307
        %v327 = vpack.c.bf16 %v309, %v309
        %v328 = vpack.c.bf16 %v312, %v312
        %v329 = vpack.c.bf16 %v314, %v314
        %v330 = vpack.c.bf16 %v317, %v317
        %v331 = vpack.c.bf16 %v319, %v319
        %v332 = vpack.c.bf16 %v322, %v322
        %v333 = vpack.c.bf16 %v324, %v324
        %334 = vst [vmem:[%s197] sm:$0xf] %v326
        %335 = vst [vmem:[%s197 + $0x4] sm:$0xf] %v327
        %336 = vst [vmem:[%s197 + $0x8] sm:$0xf] %v328
        %337 = vst [vmem:[%s197 + $0xc] sm:$0xf] %v329
        %338 = vst [vmem:[%s197 + $0x10] sm:$0xf] %v330
        %339 = vst [vmem:[%s197 + $0x14] sm:$0xf] %v331
        %340 = vst [vmem:[%s197 + $0x18] sm:$0xf] %v332
        %341 = vst [vmem:[%s197 + $0x1c] sm:$0xf] %v333
        %s342 = sand.u32 %s91, 1
        %s343 = scalar_lea.sflag [#allocation4], %s342
        %s344 = sand.u32 %s91, 1
        %s345 = smul.addr %s344, 32
        %s346 = scalar_lea.vmem [#allocation7], %s345
        // Predicated region
        $region37: #{tpu_custom_call.1} parent=27 // pred_check
          %p347 = pneg %p101
        $region38: #{tpu_custom_call.1} parent=27 // pred_check_branch
          %349 = sbr.rel (%p347) target = $region40
        $region39: #{tpu_custom_call.1} parent=27 // pred_region
          %s350 = smul.u32 8, %s25
          %352 = vsyncadd %s343, 0
          %s353 = smul.addr %s350, 2
          %s354 = sadd.s32 %s24, %s353
          %s355 = smul.addr %s354, 4
          %s356 = scalar_lea.hbm %s2, %s355
          %s357 = sshll.u32 %s346, 4
          %s358 = int_to_ptr.vmem [resolvable:$true] %s357
          %s359 = sshll.u32 %s356, 4
          %s360 = int_to_ptr.hbm [resolvable:$true] %s359
          %365 = dma.vmem_to_hbm [thread:$0]  %s358, 512, %s360, %s343, 64, 128, 4
        $region40: #{tpu_custom_call.1} parent=27 // pred_fallthru
          _
      $region28: #{tpu_custom_call.1} parent=5 // pred_fallthru
        _
      %p366 = scmp.le.s32.totalorder 2, %s15
      // Predicated region
      $region41: #{tpu_custom_call.1} parent=5 // pred_check
        %p367 = pneg %p366
      $region42: #{tpu_custom_call.1} parent=5 // pred_check_branch
        %369 = sbr.rel (%p367) target = $region44
      $region43: #{tpu_custom_call.1} parent=5 // pred_region
        %s370 = ssub.s32 %s15, 2
        // Predicated region
        $region45: #{tpu_custom_call.1} parent=43 // pred_check
          %p371 = pneg %p107
        $region46: #{tpu_custom_call.1} parent=43 // pred_check_branch
          %373 = sbr.rel (%p371) target = $region48
        $region47: #{tpu_custom_call.1} parent=43 // pred_region
          %s374 = sand.u32 %s92, 1
          %s375 = scalar_lea.sflag [#allocation4], %s374
          %s376 = sand.u32 %s92, 1
          %s377 = smul.addr %s376, 32
          %s378 = scalar_lea.vmem [#allocation7], %s377
          %380 = dma.done %s375, 512
        $region48: #{tpu_custom_call.1} parent=43 // pred_fallthru
          _
      $region44: #{tpu_custom_call.1} parent=5 // pred_fallthru
        _
    $region6: #{tpu_custom_call.1} parent=1 // loop_footer
      %s19 = sadd.s32 1, %s15
    $region7: #{tpu_custom_call.1} parent=1 // loop_footer_branch
      %14 = sbr.rel target = $region3
    $region8: #{tpu_custom_call.1} parent=1 // loop_exit
      _
    %381 = vsyncpa [#allocation3], 1
    %s382 = scalar_lea.sflag [#allocation3], 1
    %383 = vsyncpa %s382, 1
    %384 = vsyncpa [#allocation6], 1
    %385 = vsyncpa [#allocation4], 1
    %s386 = scalar_lea.sflag [#allocation4], 1
    %387 = vsyncpa %s386, 1

</llo_original>
